<compile_context>
chip_gen: v6e
topology: v6e:2x2x1
jax: 0.10.0
libtpu: 0.0.40
codegen_flags: <defaults>
</compile_context>

<pallas_src>
import math

import jax
import jax.numpy as jnp
from jax import lax
from jax.experimental import pallas as pl
from jax.experimental.pallas import tpu as pltpu


def _make_arcface_kernel(k: int, tl: int, cos_m: float, sin_m: float,
                         th: float, mm: float, s: float):
    def kernel(xn_ref, w_ref, lab_ref, logits_ref, margin_ref):
        # xn_ref : (B, D)      bf16, pre-normalized features (resident block)
        # w_ref  : (k, TL, D)  bf16, pre-normalized weight tile (streamed)
        # lab_ref: (B, 1)      int32 labels
        xn = xn_ref[...]                                        # (B, D) bf16
        kb, tlb, d = w_ref.shape
        w = w_ref[...].reshape(kb * tlb, d)                     # (k*TL, D) bf16

        # One fused MXU matmul for all k sub-centers, f32 accumulation.
        cos_all = lax.dot_general(xn, w, (((1,), (1,)), ((), ())),
                                  preferred_element_type=jnp.float32)  # (B, k*TL)

        # Max over sub-centers: static, lane-aligned slices of the result.
        cos = cos_all[:, 0:tl]
        for j in range(1, k):
            cos = jnp.maximum(cos, cos_all[:, j * tl:(j + 1) * tl])

        logits_ref[...] = cos                                   # first output

        # ---- ArcFace additive-angular margin (per label tile) ----
        labels = lab_ref[...]                                   # (B, 1) int32
        col0 = pl.program_id(0) * tl
        classes = col0 + lax.broadcasted_iota(jnp.int32, cos.shape, 1)

        # Clamp cos^2 <= 1 to avoid NaN from fp rounding; only deviates from
        # the PyTorch reference in the pathological case where it would NaN.
        cos2 = jnp.minimum(cos * cos, 1.0)
        sine = jnp.sqrt(1.0 - cos2)
        phi = cos * cos_m - sine * sin_m
        phi = jnp.where(cos > th, phi, cos - mm)
        margin_ref[...] = s * jnp.where(classes == labels, phi, cos)

    return kernel


def prepare_arcface_weight(weight, *, num_labels, num_sub_centers):
    """One-time weight preparation (cache alongside the parameter).

    weight: (num_labels * k, D) f32, row l*k + j = sub-center j of label l
            (matches cosine_all.view(-1, out_features, k) in PyTorch).
    Returns (k, num_labels, D) bf16, row-normalized.
    """
    L, k = num_labels, num_sub_centers
    D = weight.shape[-1]
    assert weight.shape == (L * k, D)
    # F.normalize(W): w / max(||w||, 1e-12)  ==  w * rsqrt(max(||w||^2, 1e-24))
    inv_norm = lax.rsqrt(jnp.maximum(
        jnp.sum(weight.astype(jnp.float32) ** 2, axis=-1, keepdims=True), 1e-24))
    wn = weight.astype(jnp.float32) * inv_norm
    w_klD = jnp.transpose(wn.reshape(L, k, D), (1, 0, 2))
    return w_klD.astype(jnp.bfloat16)


def arcface_single_domain(x, w_prepared, labels, *, num_labels, num_sub_centers,
                          arcface_scale=30.0, margin=0.3, label_tile=None):
    """x: (B, D) f32; w_prepared: (k, L, D) bf16 from prepare_arcface_weight;
    labels: (B,) int32.  Returns (logits, logits_with_margin), both (B, L) f32."""
    B, D = x.shape
    k, L = num_sub_centers, num_labels
    assert w_prepared.shape == (k, L, D)

    if label_tile is None:
        label_tile = L if L <= 1024 else 1024
    tl = label_tile
    grid = (pl.cdiv(L, tl),)

    # Normalize x once (tiny: B x D), rsqrt instead of sqrt+div, cast to bf16.
    xn = x.astype(jnp.float32)
    xn = xn * lax.rsqrt(jnp.maximum(jnp.sum(xn * xn, axis=-1, keepdims=True), 1e-24))
    xn = xn.astype(jnp.bfloat16)
    labels_2d = labels.reshape(B, 1).astype(jnp.int32)

    cos_m = math.cos(margin)
    sin_m = math.sin(margin)
    th = math.cos(math.pi - margin)
    mm = math.sin(math.pi - margin) * margin

    kernel = _make_arcface_kernel(k, tl, cos_m, sin_m, th, mm, arcface_scale)

    logits, logits_with_margin = pl.pallas_call(
        kernel,
        out_shape=(jax.ShapeDtypeStruct((B, L), jnp.float32),
                   jax.ShapeDtypeStruct((B, L), jnp.float32)),
        grid=grid,
        in_specs=[
            pl.BlockSpec((B, D), lambda j: (0, 0)),        # xn: resident
            pl.BlockSpec((k, tl, D), lambda j: (0, j, 0)),  # weight: streamed
            pl.BlockSpec((B, 1), lambda j: (0, 0)),         # labels: resident
        ],
        out_specs=(pl.BlockSpec((B, tl), lambda j: (0, j)),
                   pl.BlockSpec((B, tl), lambda j: (0, j))),
        compiler_params=pltpu.CompilerParams(
            dimension_semantics=("parallel",),              # both TCs on v7x
            vmem_limit_bytes=48 * 1024 * 1024,              # headroom on v7x
        ),
    )(xn, w_prepared, labels_2d)

    return logits, logits_with_margin


def _reference(x, weight, labels, *, num_labels, num_sub_centers,
               arcface_scale, margin):
    # Pure-JAX f32 reference mirroring the PyTorch module.
    k, L = num_sub_centers, num_labels
    xn = x / jnp.maximum(jnp.linalg.norm(x, axis=-1, keepdims=True), 1e-12)
    wn = weight / jnp.maximum(jnp.linalg.norm(weight, axis=-1, keepdims=True), 1e-12)
    cosine_all = (xn @ wn.T).reshape(-1, L, k)
    cos = jnp.max(cosine_all, axis=2)
    cos_m, sin_m = math.cos(margin), math.sin(margin)
    th, mm = math.cos(math.pi - margin), math.sin(math.pi - margin) * margin
    sine = jnp.sqrt(1.0 - cos * cos)
    phi = cos * cos_m - sine * sin_m
    phi = jnp.where(cos > th, phi, cos - mm)
    one_hot = jax.nn.one_hot(labels, L, dtype=jnp.float32)
    out = arcface_scale * (one_hot * phi + (1.0 - one_hot) * cos)
    return cos, out


if __name__ == "__main__":
    # Small shapes consistent with the module; L picked so the label grid has
    # several tiles and exercises the weight-streaming pipeline.
    B = 8
    embed_dim = 64
    num_labels = 512
    num_sub_centers = 2
    arcface_scale = 30.0
    margin = 0.3
    label_tile = 128

    key = jax.random.PRNGKey(0)
    kx, kw, kl = jax.random.split(key, 3)

    x = jax.random.normal(kx, (B, embed_dim), dtype=jnp.float32)

    # nn.Parameter uniform(-stdv, stdv), stdv = 1/sqrt(in_features).
    stdv = 1.0 / math.sqrt(embed_dim)
    weight = jax.random.uniform(kw, (num_labels * num_sub_centers, embed_dim),
                                minval=-stdv, maxval=stdv, dtype=jnp.float32)
    labels = jax.random.randint(kl, (B,), 0, num_labels, dtype=jnp.int32)

    # One-time weight prep (normalize + reorder + bf16); cached with the param.
    w_prepared = prepare_arcface_weight(
        weight, num_labels=num_labels, num_sub_centers=num_sub_centers)

    logits, logits_margin = arcface_single_domain(
        x, w_prepared, labels,
        num_labels=num_labels, num_sub_centers=num_sub_centers,
        arcface_scale=arcface_scale, margin=margin, label_tile=label_tile)
    jax.block_until_ready((logits, logits_margin))

    ref_logits, ref_margin = _reference(
        x, weight, labels,
        num_labels=num_labels, num_sub_centers=num_sub_centers,
        arcface_scale=arcface_scale, margin=margin)

    # Tolerances relaxed for bf16 weight/feature streaming (cosines ~1e-3 off).
    assert jnp.allclose(logits, ref_logits, atol=1e-2, rtol=1e-2), \
        float(jnp.max(jnp.abs(logits - ref_logits)))
    assert jnp.allclose(logits_margin, ref_margin, atol=0.25, rtol=1e-2), \
        float(jnp.max(jnp.abs(logits_margin - ref_margin)))

    print("KERNEL_OK")
</pallas_src>

<mosaic_0001>
module attributes {stable_mosaic.version = 11 : i64} {
  func.func @kernel(%arg0: i32, %arg1: memref<8x64xbf16, #tpu.memory_space<vmem>>, %arg2: memref<2x128x64xbf16, #tpu.memory_space<vmem>>, %arg3: memref<8x1xi32, #tpu.memory_space<vmem>>, %arg4: memref<8x128xf32, #tpu.memory_space<vmem>>, %arg5: memref<8x128xf32, #tpu.memory_space<vmem>>) attributes {dimension_semantics = [#tpu.dimension_semantics<parallel>], iteration_bounds = array<i64: 4>, scalar_prefetch = 0 : i64, scratch_operands = 0 : i64, tpu.core_type = #tpu.core_type<tc>, window_params = [{pipeline_mode = #tpu.pipeline_mode<synchronous>, transform_indices = @transform_0, window_bounds = array<i64: 8, 64>}, {transform_indices = @transform_1, window_bounds = array<i64: 2, 128, 64>}, {pipeline_mode = #tpu.pipeline_mode<synchronous>, transform_indices = @transform_2, window_bounds = array<i64: 8, 1>}, {transform_indices = @transform_3, window_bounds = array<i64: 8, 128>}, {transform_indices = @transform_4, window_bounds = array<i64: 8, 128>}]} {
    %c0 = arith.constant 0 : index
    %c0_0 = arith.constant 0 : index
    %0 = vector.load %arg1[%c0, %c0_0] : memref<8x64xbf16, #tpu.memory_space<vmem>>, vector<8x64xbf16>
    %c0_1 = arith.constant 0 : index
    %c0_2 = arith.constant 0 : index
    %c0_3 = arith.constant 0 : index
    %1 = vector.load %arg2[%c0_1, %c0_2, %c0_3] : memref<2x128x64xbf16, #tpu.memory_space<vmem>>, vector<2x128x64xbf16>
    %2 = vector.shape_cast %1 : vector<2x128x64xbf16> to vector<256x64xbf16>
    %cst = arith.constant dense<0.000000e+00> : vector<8x256xf32>
    %3 = tpu.matmul %0, %2, %cst {dimension_numbers = #tpu.dot_dimension_numbers<[1], [1], [0], [0], [0, 0, 1, 0], [], []>} : vector<8x64xbf16>, vector<256x64xbf16>, vector<8x256xf32> -> vector<8x256xf32>
    %4 = vector.extract_strided_slice %3 {offsets = [0, 0], sizes = [8, 128], strides = [1, 1]} : vector<8x256xf32> to vector<8x128xf32>
    %5 = vector.extract_strided_slice %3 {offsets = [0, 128], sizes = [8, 128], strides = [1, 1]} : vector<8x256xf32> to vector<8x128xf32>
    %6 = arith.maximumf %4, %5 : vector<8x128xf32>
    %c0_4 = arith.constant 0 : index
    %c0_5 = arith.constant 0 : index
    %7 = vector.load %arg4[%c0_4, %c0_5] : memref<8x128xf32, #tpu.memory_space<vmem>>, vector<8x128xf32>
    tpu.vector_store %arg4[%c0_4, %c0_5], %6 {strides = array<i32>} : memref<8x128xf32, #tpu.memory_space<vmem>>, vector<8x128xf32>,
    %c0_6 = arith.constant 0 : index
    %c0_7 = arith.constant 0 : index
    %8 = vector.load %arg3[%c0_6, %c0_7] : memref<8x1xi32, #tpu.memory_space<vmem>>, vector<8x1xi32>
    %c128_i32 = arith.constant 128 : i32
    %9 = arith.muli %arg0, %c128_i32 : i32
    %10 = tpu.iota {dimensions = array<i32: 1>} : vector<8x128xi32>
    %11 = vector.broadcast %9 : i32 to vector<8x128xi32>
    %12 = arith.addi %11, %10 : vector<8x128xi32>
    %13 = arith.mulf %6, %6 : vector<8x128xf32>
    %cst_8 = arith.constant 1.000000e+00 : f32
    %14 = vector.broadcast %cst_8 : f32 to vector<8x128xf32>
    %15 = arith.minimumf %13, %14 : vector<8x128xf32>
    %cst_9 = arith.constant 1.000000e+00 : f32
    %16 = vector.broadcast %cst_9 : f32 to vector<8x128xf32>
    %17 = arith.subf %16, %15 : vector<8x128xf32>
    %18 = math.sqrt %17 : vector<8x128xf32>
    %cst_10 = arith.constant 0.955336511 : f32
    %19 = vector.broadcast %cst_10 : f32 to vector<8x128xf32>
    %20 = arith.mulf %6, %19 : vector<8x128xf32>
    %cst_11 = arith.constant 0.295520216 : f32
    %21 = vector.broadcast %cst_11 : f32 to vector<8x128xf32>
    %22 = arith.mulf %18, %21 : vector<8x128xf32>
    %23 = arith.subf %20, %22 : vector<8x128xf32>
    %cst_12 = arith.constant -0.955336511 : f32
    %24 = vector.broadcast %cst_12 : f32 to vector<8x128xf32>
    %25 = arith.cmpf ogt, %6, %24 : vector<8x128xf32>
    %cst_13 = arith.constant 0.0886560603 : f32
    %26 = vector.broadcast %cst_13 : f32 to vector<8x128xf32>
    %27 = arith.subf %6, %26 : vector<8x128xf32>
    %28 = arith.select %25, %23, %27 : vector<8x128xi1>, vector<8x128xf32>
    %29 = vector.broadcast %8 : vector<8x1xi32> to vector<8x128xi32>
    %30 = arith.cmpi eq, %12, %29 : vector<8x128xi32>
    %31 = arith.select %30, %28, %6 : vector<8x128xi1>, vector<8x128xf32>
    %cst_14 = arith.constant 3.000000e+01 : f32
    %32 = vector.broadcast %cst_14 : f32 to vector<8x128xf32>
    %33 = arith.mulf %32, %31 : vector<8x128xf32>
    %c0_15 = arith.constant 0 : index
    %c0_16 = arith.constant 0 : index
    %34 = vector.load %arg5[%c0_15, %c0_16] : memref<8x128xf32, #tpu.memory_space<vmem>>, vector<8x128xf32>
    tpu.vector_store %arg5[%c0_15, %c0_16], %33 {strides = array<i32>} : memref<8x128xf32, #tpu.memory_space<vmem>>, vector<8x128xf32>,
    return
  }
  func.func @transform_0(%arg0: i32) -> (i32, i32) {
    %c0_i32 = arith.constant 0 : i32
    %c0_i32_0 = arith.constant 0 : i32
    %c0_i32_1 = arith.constant 0 : i32
    return %c0_i32, %c0_i32_0 : i32, i32
  }
  func.func @transform_1(%arg0: i32) -> (i32, i32, i32) {
    %c0_i32 = arith.constant 0 : i32
    %c0_i32_0 = arith.constant 0 : i32
    %c0_i32_1 = arith.constant 0 : i32
    return %c0_i32, %arg0, %c0_i32_0 : i32, i32, i32
  }
  func.func @transform_2(%arg0: i32) -> (i32, i32) {
    %c0_i32 = arith.constant 0 : i32
    %c0_i32_0 = arith.constant 0 : i32
    %c0_i32_1 = arith.constant 0 : i32
    return %c0_i32, %c0_i32_0 : i32, i32
  }
  func.func @transform_3(%arg0: i32) -> (i32, i32) {
    %c0_i32 = arith.constant 0 : i32
    %c0_i32_0 = arith.constant 0 : i32
    return %c0_i32, %arg0 : i32, i32
  }
  func.func @transform_4(%arg0: i32) -> (i32, i32) {
    %c0_i32 = arith.constant 0 : i32
    %c0_i32_0 = arith.constant 0 : i32
    return %c0_i32, %arg0 : i32, i32
  }
}

</mosaic_0001>

<llo_original>
// kernel: tpu_custom_call.1
$region0: #{tpu_custom_call.1}
  #allocation0 [shape = 'u32[]', space=smem, size = 0x4, offset = 0x4, fixed_abs, tag = 'smem constant byte address 0x4 - core index']
  #allocation1 [shape = 'u32[144,128]{1,0:T(1,128)}', space=vmem, size = 0x12000, scoped, tag = 'internal scratch']
  %s0 = inlined_call_operand.vmem [shape: bf16[8,64], index: 0, kind: input, shape index: {}]
  %s1 = inlined_call_operand.vmem [shape: bf16[2,512,64], index: 1, kind: input, shape index: {}]
  %s2 = inlined_call_operand.vmem [shape: s32[8,1], index: 2, kind: input, shape index: {}]
  %s3 = inlined_call_operand.hbm [shape: f32[8,512], index: 3, kind: output, shape index: {0}]
  %s4 = inlined_call_operand.hbm [shape: f32[8,512], index: 4, kind: output, shape index: {1}]
  %5 = xla_tuple %s3, %s4
  %s6 = sld [smem:[#allocation0]]
  $region94: #{tpu_custom_call.1} parent=0
    _
  %s8 = ssub.s32 1, %s6
  %s9 = scalar_select 0, %s8, %s6
  $region1: #{tpu_custom_call.1} parent=0
    #allocation2 [shape = 'u8[131072]{0}', space=vmem, size = 0x20000, scoped, tag = 'input window, operand 1']
    #allocation3 [shape = 'u8[8192]{0}', space=vmem, size = 0x2000, scoped, tag = 'output window, operand 0']
    #allocation4 [shape = 's32[2]{0}', space=sflag, size = 0x8, scoped, tag = 'scoped memory for tpu_custom_call.1']
    #allocation5 [shape = 'u8[8192]{0}', space=vmem, size = 0x2000, scoped, tag = 'output window, operand 1']
    #allocation6 [shape = 's32[2]{0}', space=sflag, size = 0x8, scoped, tag = 'scoped memory for tpu_custom_call.1']
    %10 = vsyncpa [#allocation4], 0
    %s11 = scalar_lea.sflag [#allocation4], 1
    %12 = vsyncpa %s11, 0
    %13 = vsyncpa [#allocation6], 0
    %s14 = scalar_lea.sflag [#allocation6], 1
    %15 = vsyncpa %s14, 0
    loop: start=0, step=1, limit=6
    $region2: #{tpu_custom_call.1} parent=1 // loop_pre_header
      _
    $region3: #{tpu_custom_call.1} parent=1 // loop_header
      %s17 = sphi 0, %s21
      %p18 = scmp.ge.s32.totalorder %s17, 6
      %s25 = sphi 0, %s25
      %s27 = sphi 0, %s25
      %s28 = sphi 0, %s27
      %s42 = sphi 0, %s28
      %s48 = sphi 0, %s50
      %s51 = sphi 0, %s48
      %s52 = sphi 0, %s51
      %s68 = sphi 0, %s52
      %s72 = sphi 0, %s72
      %s74 = sphi 0, %s72
      %s75 = sphi 0, %s74
      %s89 = sphi 0, %s75
      %s95 = sphi 0, %s97
      %s98 = sphi 0, %s95
      %s99 = sphi 0, %s98
      %s115 = sphi 0, %s99
      %s121 = sphi 0, %s123
      %s124 = sphi 0, %s121
      %s125 = sphi 0, %s124
      %s141 = sphi 0, %s125
    $region4: #{tpu_custom_call.1} parent=1 // loop_header_branch
      %20 = sbr.rel (%p18) target = $region8
    $region5: #{tpu_custom_call.1} parent=1 // loop_body
      %s22 = ssub.s32 %s17, 1
      %s23 = ssub.s32 %s17, 2
      %s24 = sadd.s32 %s17, 1
      %s26 = sadd.s32 %s25, 1
      %p29 = scmp.eq.s32.totalorder %s17, 3
      %p30 = scmp.ne.s32.totalorder %s25, %s27
      %p31 = scmp.eq.s32.totalorder %s17, 0
      %p32 = por %p30, %p31
      %p33 = scmp.ne.s32.totalorder %s25, %s27
      %p34 = scmp.eq.s32.totalorder %s22, 3
      %p35 = por %p33, %p34
      %p36 = scmp.ne.s32.totalorder %s27, %s28
      %p37 = scmp.eq.s32.totalorder %s22, 0
      %p38 = por %p36, %p37
      %p39 = scmp.ne.s32.totalorder %s27, %s28
      %p40 = scmp.eq.s32.totalorder %s23, 3
      %p41 = por %p39, %p40
      %p43 = scmp.ne.s32.totalorder %s28, %s42
      %p44 = scmp.eq.s32.totalorder %s23, 0
      %p45 = por %p43, %p44
      %s46 = ssub.s32 %s17, %s24
      %p47 = scmp.eq.s32.totalorder %s46, 0
      %s49 = sadd.s32 %s48, 1
      %s50 = scalar_select %p47, %s48, %s49
      %p53 = pneg %p47
      %p54 = scmp.eq.s32.totalorder %s17, 3
      %p55 = por %p53, %p54
      %p56 = scmp.ne.s32.totalorder %s48, %s51
      %p57 = scmp.eq.s32.totalorder %s17, 0
      %p58 = por %p56, %p57
      %p59 = scmp.ne.s32.totalorder %s48, %s51
      %p60 = scmp.eq.s32.totalorder %s22, 3
      %p61 = por %p59, %p60
      %p62 = scmp.ne.s32.totalorder %s51, %s52
      %p63 = scmp.eq.s32.totalorder %s22, 0
      %p64 = por %p62, %p63
      %p65 = scmp.ne.s32.totalorder %s51, %s52
      %p66 = scmp.eq.s32.totalorder %s23, 3
      %p67 = por %p65, %p66
      %p69 = scmp.ne.s32.totalorder %s52, %s68
      %p70 = scmp.eq.s32.totalorder %s23, 0
      %p71 = por %p69, %p70
      %s73 = sadd.s32 %s72, 1
      %p76 = scmp.eq.s32.totalorder %s17, 3
      %p77 = scmp.ne.s32.totalorder %s72, %s74
      %p78 = scmp.eq.s32.totalorder %s17, 0
      %p79 = por %p77, %p78
      %p80 = scmp.ne.s32.totalorder %s72, %s74
      %p81 = scmp.eq.s32.totalorder %s22, 3
      %p82 = por %p80, %p81
      %p83 = scmp.ne.s32.totalorder %s74, %s75
      %p84 = scmp.eq.s32.totalorder %s22, 0
      %p85 = por %p83, %p84
      %p86 = scmp.ne.s32.totalorder %s74, %s75
      %p87 = scmp.eq.s32.totalorder %s23, 3
      %p88 = por %p86, %p87
      %p90 = scmp.ne.s32.totalorder %s75, %s89
      %p91 = scmp.eq.s32.totalorder %s23, 0
      %p92 = por %p90, %p91
      %s93 = ssub.s32 %s17, %s24
      %p94 = scmp.eq.s32.totalorder %s93, 0
      %s96 = sadd.s32 %s95, 1
      %s97 = scalar_select %p94, %s95, %s96
      %p100 = pneg %p94
      %p101 = scmp.eq.s32.totalorder %s17, 3
      %p102 = por %p100, %p101
      %p103 = scmp.ne.s32.totalorder %s95, %s98
      %p104 = scmp.eq.s32.totalorder %s17, 0
      %p105 = por %p103, %p104
      %p106 = scmp.ne.s32.totalorder %s95, %s98
      %p107 = scmp.eq.s32.totalorder %s22, 3
      %p108 = por %p106, %p107
      %p109 = scmp.ne.s32.totalorder %s98, %s99
      %p110 = scmp.eq.s32.totalorder %s22, 0
      %p111 = por %p109, %p110
      %p112 = scmp.ne.s32.totalorder %s98, %s99
      %p113 = scmp.eq.s32.totalorder %s23, 3
      %p114 = por %p112, %p113
      %p116 = scmp.ne.s32.totalorder %s99, %s115
      %p117 = scmp.eq.s32.totalorder %s23, 0
      %p118 = por %p116, %p117
      %s119 = ssub.s32 %s17, %s24
      %p120 = scmp.eq.s32.totalorder %s119, 0
      %s122 = sadd.s32 %s121, 1
      %s123 = scalar_select %p120, %s121, %s122
      %p126 = pneg %p120
      %p127 = scmp.eq.s32.totalorder %s17, 3
      %p128 = por %p126, %p127
      %p129 = scmp.ne.s32.totalorder %s121, %s124
      %p130 = scmp.eq.s32.totalorder %s17, 0
      %p131 = por %p129, %p130
      %p132 = scmp.ne.s32.totalorder %s121, %s124
      %p133 = scmp.eq.s32.totalorder %s22, 3
      %p134 = por %p132, %p133
      %p135 = scmp.ne.s32.totalorder %s124, %s125
      %p136 = scmp.eq.s32.totalorder %s22, 0
      %p137 = por %p135, %p136
      %p138 = scmp.ne.s32.totalorder %s124, %s125
      %p139 = scmp.eq.s32.totalorder %s23, 3
      %p140 = por %p138, %p139
      %p142 = scmp.ne.s32.totalorder %s125, %s141
      %p143 = scmp.eq.s32.totalorder %s23, 0
      %p144 = por %p142, %p143
      %p145 = scmp.le.s32.totalorder 1, %s17
      %p146 = scmp.lt.s32.totalorder %s17, 5
      %p147 = pnand %p145, %p146
      %p148 = pneg %p147
      // Predicated region
      $region9: #{tpu_custom_call.1} parent=5 // pred_check
        _
      $region10: #{tpu_custom_call.1} parent=5 // pred_check_branch
        %150 = sbr.rel (%p147) target = $region12
      $region11: #{tpu_custom_call.1} parent=5 // pred_region
        %s151 = ssub.s32 %s17, 1
        // Predicated region
        $region13: #{tpu_custom_call.1} parent=11 // pred_check
          %p152 = pneg %p38
        $region14: #{tpu_custom_call.1} parent=11 // pred_check_branch
          %154 = sbr.rel (%p152) target = $region16
        $region15: #{tpu_custom_call.1} parent=11 // pred_region
          _
        $region16: #{tpu_custom_call.1} parent=11 // pred_fallthru
          _
        // Predicated region
        $region17: #{tpu_custom_call.1} parent=11 // pred_check
          %p155 = pneg %p85
        $region18: #{tpu_custom_call.1} parent=11 // pred_check_branch
          %157 = sbr.rel (%p155) target = $region20
        $region19: #{tpu_custom_call.1} parent=11 // pred_region
          _
        $region20: #{tpu_custom_call.1} parent=11 // pred_fallthru
          _
      $region12: #{tpu_custom_call.1} parent=5 // pred_fallthru
        _
      %p158 = scmp.lt.s32.totalorder %s17, 4
      // Predicated region
      $region21: #{tpu_custom_call.1} parent=5 // pred_check
        %p159 = pneg %p158
      $region22: #{tpu_custom_call.1} parent=5 // pred_check_branch
        %161 = sbr.rel (%p159) target = $region24
      $region23: #{tpu_custom_call.1} parent=5 // pred_region
        // Predicated region
        $region25: #{tpu_custom_call.1} parent=23 // pred_check
          %p162 = pneg %p58
        $region26: #{tpu_custom_call.1} parent=23 // pred_check_branch
          %164 = sbr.rel (%p162) target = $region28
        $region27: #{tpu_custom_call.1} parent=23 // pred_region
          %s165 = sand.u32 %s48, 1
          %s166 = sand.u32 %s48, 1
          %s167 = smul.addr %s166, 128
          %s168 = scalar_lea.vmem [#allocation2], %s167
          %s169 = smul.u32 16, %s17
          %s170 = smul.addr %s169, 4
          %s171 = scalar_lea.vmem %s1, %s170
          // Predicated region
          $region29: #{tpu_custom_call.1} parent=27 // pred_check
            _
          $region30: #{tpu_custom_call.1} parent=27 // pred_check_branch
            %173 = sbr.rel (0) target = $region32
          $region31: #{tpu_custom_call.1} parent=27 // pred_region
            // Predicated region
            $region33: #{tpu_custom_call.1} parent=31 // pred_check
              _
            $region34: #{tpu_custom_call.1} parent=31 // pred_check_branch
              %175 = sbr.rel target = $region36
            $region35: #{tpu_custom_call.1} parent=31 // pred_region
              // Predicated region
              $region48: #{tpu_custom_call.1} parent=35 // pred_check
                _
              $region49: #{tpu_custom_call.1} parent=35 // pred_check_branch
                %253 = sbr.rel (0) target = $region51
              $region50: #{tpu_custom_call.1} parent=35 // pred_region
                loop: start=0, step=1, limit=1
                $region52: #{tpu_custom_call.1} parent=50 // loop_pre_header
                  _
                $region53: #{tpu_custom_call.1} parent=50 // loop_header
                  %s255 = sphi 0, %s259
                  %p256 = scmp.ge.s32.totalorder %s255, 1
                  %s260 = sphi %s171, %s171
                  %s261 = sphi %s168, %s168
                $region54: #{tpu_custom_call.1} parent=50 // loop_header_branch
                  %258 = sbr.rel (%p256) target = $region58
                $region55: #{tpu_custom_call.1} parent=50 // loop_body
                  _
                $region56: #{tpu_custom_call.1} parent=50 // loop_footer
                  %s259 = sadd.s32 1, %s255
                $region57: #{tpu_custom_call.1} parent=50 // loop_footer_branch
                  %254 = sbr.rel target = $region53
                $region58: #{tpu_custom_call.1} parent=50 // loop_exit
                  _
                %s263 = ssub.s32 16, 1
                loop: start=0, step=1, limit=1
                $region59: #{tpu_custom_call.1} parent=50 // loop_pre_header
                  _
                $region60: #{tpu_custom_call.1} parent=50 // loop_header
                  %s265 = sphi 0, %s269
                  %p266 = scmp.ge.s32.totalorder %s265, 1
                  %s270 = sphi %s171, %s171
                  %s271 = sphi %s168, %s168
                $region61: #{tpu_custom_call.1} parent=50 // loop_header_branch
                  %268 = sbr.rel (%p266) target = $region65
                $region62: #{tpu_custom_call.1} parent=50 // loop_body
                  %v272 = vld [vmem:[%s270] sm:%s263]
                  %273 = vst [vmem:[%s271] sm:%s263] %v272
                  %v274 = vld [vmem:[%s270 + $0x4] sm:%s263]
                  %275 = vst [vmem:[%s271 + $0x4] sm:%s263] %v274
                  %v276 = vld [vmem:[%s270 + $0x8] sm:%s263]
                  %277 = vst [vmem:[%s271 + $0x8] sm:%s263] %v276
                  %v278 = vld [vmem:[%s270 + $0xc] sm:%s263]
                  %279 = vst [vmem:[%s271 + $0xc] sm:%s263] %v278
                  %v280 = vld [vmem:[%s270 + $0x10] sm:%s263]
                  %281 = vst [vmem:[%s271 + $0x10] sm:%s263] %v280
                  %v282 = vld [vmem:[%s270 + $0x14] sm:%s263]
                  %283 = vst [vmem:[%s271 + $0x14] sm:%s263] %v282
                  %v284 = vld [vmem:[%s270 + $0x18] sm:%s263]
                  %285 = vst [vmem:[%s271 + $0x18] sm:%s263] %v284
                  %v286 = vld [vmem:[%s270 + $0x1c] sm:%s263]
                  %287 = vst [vmem:[%s271 + $0x1c] sm:%s263] %v286
                  %v288 = vld [vmem:[%s270 + $0x20] sm:%s263]
                  %289 = vst [vmem:[%s271 + $0x20] sm:%s263] %v288
                  %v290 = vld [vmem:[%s270 + $0x24] sm:%s263]
                  %291 = vst [vmem:[%s271 + $0x24] sm:%s263] %v290
                  %v292 = vld [vmem:[%s270 + $0x28] sm:%s263]
                  %293 = vst [vmem:[%s271 + $0x28] sm:%s263] %v292
                  %v294 = vld [vmem:[%s270 + $0x2c] sm:%s263]
                  %295 = vst [vmem:[%s271 + $0x2c] sm:%s263] %v294
                  %v296 = vld [vmem:[%s270 + $0x30] sm:%s263]
                  %297 = vst [vmem:[%s271 + $0x30] sm:%s263] %v296
                  %v298 = vld [vmem:[%s270 + $0x34] sm:%s263]
                  %299 = vst [vmem:[%s271 + $0x34] sm:%s263] %v298
                  %v300 = vld [vmem:[%s270 + $0x38] sm:%s263]
                  %301 = vst [vmem:[%s271 + $0x38] sm:%s263] %v300
                  %v302 = vld [vmem:[%s270 + $0x3c] sm:%s263]
                  %303 = vst [vmem:[%s271 + $0x3c] sm:%s263] %v302
                  %v304 = vld [vmem:[%s270 + $0x100] sm:%s263]
                  %305 = vst [vmem:[%s271 + $0x40] sm:%s263] %v304
                  %v306 = vld [vmem:[%s270 + $0x104] sm:%s263]
                  %307 = vst [vmem:[%s271 + $0x44] sm:%s263] %v306
                  %v308 = vld [vmem:[%s270 + $0x108] sm:%s263]
                  %309 = vst [vmem:[%s271 + $0x48] sm:%s263] %v308
                  %v310 = vld [vmem:[%s270 + $0x10c] sm:%s263]
                  %311 = vst [vmem:[%s271 + $0x4c] sm:%s263] %v310
                  %v312 = vld [vmem:[%s270 + $0x110] sm:%s263]
                  %313 = vst [vmem:[%s271 + $0x50] sm:%s263] %v312
                  %v314 = vld [vmem:[%s270 + $0x114] sm:%s263]
                  %315 = vst [vmem:[%s271 + $0x54] sm:%s263] %v314
                  %v316 = vld [vmem:[%s270 + $0x118] sm:%s263]
                  %317 = vst [vmem:[%s271 + $0x58] sm:%s263] %v316
                  %v318 = vld [vmem:[%s270 + $0x11c] sm:%s263]
                  %319 = vst [vmem:[%s271 + $0x5c] sm:%s263] %v318
                  %v320 = vld [vmem:[%s270 + $0x120] sm:%s263]
                  %321 = vst [vmem:[%s271 + $0x60] sm:%s263] %v320
                  %v322 = vld [vmem:[%s270 + $0x124] sm:%s263]
                  %323 = vst [vmem:[%s271 + $0x64] sm:%s263] %v322
                  %v324 = vld [vmem:[%s270 + $0x128] sm:%s263]
                  %325 = vst [vmem:[%s271 + $0x68] sm:%s263] %v324
                  %v326 = vld [vmem:[%s270 + $0x12c] sm:%s263]
                  %327 = vst [vmem:[%s271 + $0x6c] sm:%s263] %v326
                  %v328 = vld [vmem:[%s270 + $0x130] sm:%s263]
                  %329 = vst [vmem:[%s271 + $0x70] sm:%s263] %v328
                  %v330 = vld [vmem:[%s270 + $0x134] sm:%s263]
                  %331 = vst [vmem:[%s271 + $0x74] sm:%s263] %v330
                  %v332 = vld [vmem:[%s270 + $0x138] sm:%s263]
                  %333 = vst [vmem:[%s271 + $0x78] sm:%s263] %v332
                  %v334 = vld [vmem:[%s270 + $0x13c] sm:%s263]
                  %335 = vst [vmem:[%s271 + $0x7c] sm:%s263] %v334
                $region63: #{tpu_custom_call.1} parent=50 // loop_footer
                  %s269 = sadd.s32 1, %s265
                $region64: #{tpu_custom_call.1} parent=50 // loop_footer_branch
                  %264 = sbr.rel target = $region60
                $region65: #{tpu_custom_call.1} parent=50 // loop_exit
                  _
              $region51: #{tpu_custom_call.1} parent=35 // pred_fallthru
                _
            $region36: #{tpu_custom_call.1} parent=31 // pred_fallthru
              _
            // Predicated region
            $region37: #{tpu_custom_call.1} parent=31 // pred_check
              _
            $region38: #{tpu_custom_call.1} parent=31 // pred_check_branch
              %177 = sbr.rel (0) target = $region40
            $region39: #{tpu_custom_call.1} parent=31 // pred_region
              %s179 = ssub.s32 16, 1
              loop: start=0, step=1, limit=1
              $region41: #{tpu_custom_call.1} parent=39 // loop_pre_header
                _
              $region42: #{tpu_custom_call.1} parent=39 // loop_header
                %s181 = sphi 0, %s185
                %p182 = scmp.ge.s32.totalorder %s181, 1
                %s186 = sphi %s171, %s171
                %s187 = sphi %s168, %s168
              $region43: #{tpu_custom_call.1} parent=39 // loop_header_branch
                %184 = sbr.rel (%p182) target = $region47
              $region44: #{tpu_custom_call.1} parent=39 // loop_body
                %v188 = vld [vmem:[%s186] sm:%s179]
                %189 = vst [vmem:[%s187] sm:%s179] %v188
                %v190 = vld [vmem:[%s186 + $0x4] sm:%s179]
                %191 = vst [vmem:[%s187 + $0x4] sm:%s179] %v190
                %v192 = vld [vmem:[%s186 + $0x8] sm:%s179]
                %193 = vst [vmem:[%s187 + $0x8] sm:%s179] %v192
                %v194 = vld [vmem:[%s186 + $0xc] sm:%s179]
                %195 = vst [vmem:[%s187 + $0xc] sm:%s179] %v194
                %v196 = vld [vmem:[%s186 + $0x10] sm:%s179]
                %197 = vst [vmem:[%s187 + $0x10] sm:%s179] %v196
                %v198 = vld [vmem:[%s186 + $0x14] sm:%s179]
                %199 = vst [vmem:[%s187 + $0x14] sm:%s179] %v198
                %v200 = vld [vmem:[%s186 + $0x18] sm:%s179]
                %201 = vst [vmem:[%s187 + $0x18] sm:%s179] %v200
                %v202 = vld [vmem:[%s186 + $0x1c] sm:%s179]
                %203 = vst [vmem:[%s187 + $0x1c] sm:%s179] %v202
                %v204 = vld [vmem:[%s186 + $0x20] sm:%s179]
                %205 = vst [vmem:[%s187 + $0x20] sm:%s179] %v204
                %v206 = vld [vmem:[%s186 + $0x24] sm:%s179]
                %207 = vst [vmem:[%s187 + $0x24] sm:%s179] %v206
                %v208 = vld [vmem:[%s186 + $0x28] sm:%s179]
                %209 = vst [vmem:[%s187 + $0x28] sm:%s179] %v208
                %v210 = vld [vmem:[%s186 + $0x2c] sm:%s179]
                %211 = vst [vmem:[%s187 + $0x2c] sm:%s179] %v210
                %v212 = vld [vmem:[%s186 + $0x30] sm:%s179]
                %213 = vst [vmem:[%s187 + $0x30] sm:%s179] %v212
                %v214 = vld [vmem:[%s186 + $0x34] sm:%s179]
                %215 = vst [vmem:[%s187 + $0x34] sm:%s179] %v214
                %v216 = vld [vmem:[%s186 + $0x38] sm:%s179]
                %217 = vst [vmem:[%s187 + $0x38] sm:%s179] %v216
                %v218 = vld [vmem:[%s186 + $0x3c] sm:%s179]
                %219 = vst [vmem:[%s187 + $0x3c] sm:%s179] %v218
                %v220 = vld [vmem:[%s186 + $0x100] sm:%s179]
                %221 = vst [vmem:[%s187 + $0x40] sm:%s179] %v220
                %v222 = vld [vmem:[%s186 + $0x104] sm:%s179]
                %223 = vst [vmem:[%s187 + $0x44] sm:%s179] %v222
                %v224 = vld [vmem:[%s186 + $0x108] sm:%s179]
                %225 = vst [vmem:[%s187 + $0x48] sm:%s179] %v224
                %v226 = vld [vmem:[%s186 + $0x10c] sm:%s179]
                %227 = vst [vmem:[%s187 + $0x4c] sm:%s179] %v226
                %v228 = vld [vmem:[%s186 + $0x110] sm:%s179]
                %229 = vst [vmem:[%s187 + $0x50] sm:%s179] %v228
                %v230 = vld [vmem:[%s186 + $0x114] sm:%s179]
                %231 = vst [vmem:[%s187 + $0x54] sm:%s179] %v230
                %v232 = vld [vmem:[%s186 + $0x118] sm:%s179]
                %233 = vst [vmem:[%s187 + $0x58] sm:%s179] %v232
                %v234 = vld [vmem:[%s186 + $0x11c] sm:%s179]
                %235 = vst [vmem:[%s187 + $0x5c] sm:%s179] %v234
                %v236 = vld [vmem:[%s186 + $0x120] sm:%s179]
                %237 = vst [vmem:[%s187 + $0x60] sm:%s179] %v236
                %v238 = vld [vmem:[%s186 + $0x124] sm:%s179]
                %239 = vst [vmem:[%s187 + $0x64] sm:%s179] %v238
                %v240 = vld [vmem:[%s186 + $0x128] sm:%s179]
                %241 = vst [vmem:[%s187 + $0x68] sm:%s179] %v240
                %v242 = vld [vmem:[%s186 + $0x12c] sm:%s179]
                %243 = vst [vmem:[%s187 + $0x6c] sm:%s179] %v242
                %v244 = vld [vmem:[%s186 + $0x130] sm:%s179]
                %245 = vst [vmem:[%s187 + $0x70] sm:%s179] %v244
                %v246 = vld [vmem:[%s186 + $0x134] sm:%s179]
                %247 = vst [vmem:[%s187 + $0x74] sm:%s179] %v246
                %v248 = vld [vmem:[%s186 + $0x138] sm:%s179]
                %249 = vst [vmem:[%s187 + $0x78] sm:%s179] %v248
                %v250 = vld [vmem:[%s186 + $0x13c] sm:%s179]
                %251 = vst [vmem:[%s187 + $0x7c] sm:%s179] %v250
              $region45: #{tpu_custom_call.1} parent=39 // loop_footer
                %s185 = sadd.s32 1, %s181
              $region46: #{tpu_custom_call.1} parent=39 // loop_footer_branch
                %180 = sbr.rel target = $region42
              $region47: #{tpu_custom_call.1} parent=39 // loop_exit
                _
            $region40: #{tpu_custom_call.1} parent=31 // pred_fallthru
              _
          $region32: #{tpu_custom_call.1} parent=27 // pred_fallthru
            _
          %336 = vnop
        $region28: #{tpu_custom_call.1} parent=23 // pred_fallthru
          _
      $region24: #{tpu_custom_call.1} parent=5 // pred_fallthru
        _
      %p337 = scmp.le.s32.totalorder 1, %s17
      %p338 = scmp.lt.s32.totalorder %s17, 5
      %p339 = pnand %p337, %p338
      %p340 = pneg %p339
      // Predicated region
      $region66: #{tpu_custom_call.1} parent=5 // pred_check
        _
      $region67: #{tpu_custom_call.1} parent=5 // pred_check_branch
        %342 = sbr.rel (%p339) target = $region69
      $region68: #{tpu_custom_call.1} parent=5 // pred_region
        %s343 = ssub.s32 %s17, 1
        %s344 = sand.u32 %s51, 1
        %s345 = sand.u32 %s51, 1
        %s346 = smul.addr %s345, 128
        %s347 = scalar_lea.vmem [#allocation2], %s346
        // Predicated region
        $region70: #{tpu_custom_call.1} parent=68 // pred_check
          %p348 = pneg %p64
        $region71: #{tpu_custom_call.1} parent=68 // pred_check_branch
          %350 = sbr.rel (%p348) target = $region73
        $region72: #{tpu_custom_call.1} parent=68 // pred_region
          _
        $region73: #{tpu_custom_call.1} parent=68 // pred_fallthru
          _
        %p351 = pneg %p38
        %p352 = pneg %p35
        %s353 = sand.u32 %s51, 1
        %s354 = sand.u32 %s51, 1
        %s355 = smul.addr %s354, 128
        %s356 = scalar_lea.vmem [#allocation2], %s355
        %p357 = pneg %p64
        %p358 = pneg %p61
        %p359 = pneg %p85
        %p360 = pneg %p82
        %p361 = pneg %p111
        %p362 = pneg %p108
        %s363 = sand.u32 %s98, 1
        %s364 = scalar_lea.sflag [#allocation4], %s363
        %s365 = sand.u32 %s98, 1
        %s366 = smul.addr %s365, 8
        %s367 = scalar_lea.vmem [#allocation3], %s366
        %p368 = pneg %p137
        %p369 = pneg %p134
        %s370 = sand.u32 %s124, 1
        %s371 = scalar_lea.sflag [#allocation6], %s370
        %s372 = sand.u32 %s124, 1
        %s373 = smul.addr %s372, 8
        %s374 = scalar_lea.vmem [#allocation5], %s373
        %s375 = smul.u32 16, %s22
        %v377 = vld [vmem:[%s0] sm:$0xf]
        %v378 = vld [vmem:[%s347] sm:$0xf]
        %v379 = vld [vmem:[%s347 + $0x4] sm:$0xf]
        %v380 = vld [vmem:[%s347 + $0x8] sm:$0xf]
        %v381 = vld [vmem:[%s347 + $0xc] sm:$0xf]
        %v382 = vld [vmem:[%s347 + $0x10] sm:$0xf]
        %v383 = vld [vmem:[%s347 + $0x14] sm:$0xf]
        %v384 = vld [vmem:[%s347 + $0x18] sm:$0xf]
        %v385 = vld [vmem:[%s347 + $0x1c] sm:$0xf]
        %v386 = vld [vmem:[%s347 + $0x20] sm:$0xf]
        %v387 = vld [vmem:[%s347 + $0x24] sm:$0xf]
        %v388 = vld [vmem:[%s347 + $0x28] sm:$0xf]
        %v389 = vld [vmem:[%s347 + $0x2c] sm:$0xf]
        %v390 = vld [vmem:[%s347 + $0x30] sm:$0xf]
        %v391 = vld [vmem:[%s347 + $0x34] sm:$0xf]
        %v392 = vld [vmem:[%s347 + $0x38] sm:$0xf]
        %v393 = vld [vmem:[%s347 + $0x3c] sm:$0xf]
        %v394 = vld [vmem:[%s347 + $0x40] sm:$0xf]
        %v395 = vld [vmem:[%s347 + $0x44] sm:$0xf]
        %v396 = vld [vmem:[%s347 + $0x48] sm:$0xf]
        %v397 = vld [vmem:[%s347 + $0x4c] sm:$0xf]
        %v398 = vld [vmem:[%s347 + $0x50] sm:$0xf]
        %v399 = vld [vmem:[%s347 + $0x54] sm:$0xf]
        %v400 = vld [vmem:[%s347 + $0x58] sm:$0xf]
        %v401 = vld [vmem:[%s347 + $0x5c] sm:$0xf]
        %v402 = vld [vmem:[%s347 + $0x60] sm:$0xf]
        %v403 = vld [vmem:[%s347 + $0x64] sm:$0xf]
        %v404 = vld [vmem:[%s347 + $0x68] sm:$0xf]
        %v405 = vld [vmem:[%s347 + $0x6c] sm:$0xf]
        %v406 = vld [vmem:[%s347 + $0x70] sm:$0xf]
        %v407 = vld [vmem:[%s347 + $0x74] sm:$0xf]
        %v408 = vld [vmem:[%s347 + $0x78] sm:$0xf]
        %v409 = vld [vmem:[%s347 + $0x7c] sm:$0xf]
        %v442 = vunpack.c.l.b16 %v378
        %v443 = vunpack.c.l.b16 %v379
        %v444 = vunpack.c.l.b16 %v380
        %v445 = vunpack.c.l.b16 %v381
        %v446 = vunpack.c.l.b16 %v382
        %v447 = vunpack.c.l.b16 %v383
        %v448 = vunpack.c.l.b16 %v384
        %v449 = vunpack.c.l.b16 %v385
        %v450 = vunpack.c.l.b16 %v386
        %v451 = vunpack.c.l.b16 %v387
        %v452 = vunpack.c.l.b16 %v388
        %v453 = vunpack.c.l.b16 %v389
        %v454 = vunpack.c.l.b16 %v390
        %v455 = vunpack.c.l.b16 %v391
        %v456 = vunpack.c.l.b16 %v392
        %v457 = vunpack.c.l.b16 %v393
        %v458 = vunpack.c.l.b16 %v394
        %v459 = vunpack.c.l.b16 %v395
        %v460 = vunpack.c.l.b16 %v396
        %v461 = vunpack.c.l.b16 %v397
        %v462 = vunpack.c.l.b16 %v398
        %v463 = vunpack.c.l.b16 %v399
        %v464 = vunpack.c.l.b16 %v400
        %v465 = vunpack.c.l.b16 %v401
        %v466 = vunpack.c.l.b16 %v402
        %v467 = vunpack.c.l.b16 %v403
        %v468 = vunpack.c.l.b16 %v404
        %v469 = vunpack.c.l.b16 %v405
        %v470 = vunpack.c.l.b16 %v406
        %v471 = vunpack.c.l.b16 %v407
        %v472 = vunpack.c.l.b16 %v408
        %v473 = vunpack.c.l.b16 %v409
        %v474 = vpack.c.b16 %v443, %v442
        %v475 = vpack.c.b16 %v445, %v444
        %v476 = vpack.c.b16 %v447, %v446
        %v477 = vpack.c.b16 %v449, %v448
        %v478 = vpack.c.b16 %v451, %v450
        %v479 = vpack.c.b16 %v453, %v452
        %v480 = vpack.c.b16 %v455, %v454
        %v481 = vpack.c.b16 %v457, %v456
        %v482 = vpack.c.b16 %v459, %v458
        %v483 = vpack.c.b16 %v461, %v460
        %v484 = vpack.c.b16 %v463, %v462
        %v485 = vpack.c.b16 %v465, %v464
        %v486 = vpack.c.b16 %v467, %v466
        %v487 = vpack.c.b16 %v469, %v468
        %v488 = vpack.c.b16 %v471, %v470
        %v489 = vpack.c.b16 %v473, %v472
        %vm490 = vcmask 523264
        %v492 = vsel %vm490, %v377, 0
        %v495 = vsel %vm490, %v474, 0
        %v498 = vsel %vm490, %v475, 0
        %v501 = vsel %vm490, %v476, 0
        %v504 = vsel %vm490, %v477, 0
        %v507 = vsel %vm490, %v478, 0
        %v510 = vsel %vm490, %v479, 0
        %v513 = vsel %vm490, %v480, 0
        %v516 = vsel %vm490, %v481, 0
        %v519 = vsel %vm490, %v482, 0
        %v522 = vsel %vm490, %v483, 0
        %v525 = vsel %vm490, %v484, 0
        %v528 = vsel %vm490, %v485, 0
        %v531 = vsel %vm490, %v486, 0
        %v534 = vsel %vm490, %v487, 0
        %v537 = vsel %vm490, %v488, 0
        %v540 = vsel %vm490, %v489, 0
        %542 = vmatprep.subr.bf16.mxu0 0
        %543 = vmatpush1.bf16.xpose.msra.mxu0 %v516
        %544 = vmatprep.subr.bf16.mxu0 0
        %545 = vmatpush1.bf16.xpose.msra.mxu0 %v513
        %546 = vmatprep.subr.bf16.mxu0 0
        %547 = vmatpush1.bf16.xpose.msra.mxu0 %v510
        %548 = vmatprep.subr.bf16.mxu0 0
        %549 = vmatpush1.bf16.xpose.msra.mxu0 %v507
        %550 = vmatprep.subr.bf16.mxu0 0
        %551 = vmatpush1.bf16.xpose.msra.mxu0 %v504
        %552 = vmatprep.subr.bf16.mxu0 0
        %553 = vmatpush1.bf16.xpose.msra.mxu0 %v501
        %554 = vmatprep.subr.bf16.mxu0 0
        %555 = vmatpush1.bf16.xpose.msra.mxu0 %v498
        %556 = vmatprep.subr.bf16.mxu0 0
        %557 = vmatpush1.bf16.xpose.msra.mxu0 %v495
        %558 = vmatprep.subr.bf16.mxu0 0
        %559 = vmatpush2.bf16.xpose.msra.mxu0 %v540
        %560 = vmatprep.subr.bf16.mxu0 0
        %561 = vmatpush2.bf16.xpose.msra.mxu0 %v537
        %562 = vmatprep.subr.bf16.mxu0 0
        %563 = vmatpush2.bf16.xpose.msra.mxu0 %v534
        %564 = vmatprep.subr.bf16.mxu0 0
        %565 = vmatpush2.bf16.xpose.msra.mxu0 %v531
        %566 = vmatprep.subr.bf16.mxu0 0
        %567 = vmatpush2.bf16.xpose.msra.mxu0 %v528
        %568 = vmatprep.subr.bf16.mxu0 0
        %569 = vmatpush2.bf16.xpose.msra.mxu0 %v525
        %570 = vmatprep.subr.bf16.mxu0 0
        %571 = vmatpush2.bf16.xpose.msra.mxu0 %v522
        %572 = vmatprep.subr.bf16.mxu0 0
        %573 = vmatpush2.bf16.xpose.msra.mxu0 %v519
        %574 = vmatprep.mubr.bf16.mxu0 0
        %575 = vmatmul.mubr.bf16.gmra.mxu0 %v492
        %v576 = vpop.f32.mrf.mxu0
        %v577 = vadd.f32 0.0, %v576
        %v578 = vpop.f32.mrf.mxu0
        %v579 = vadd.f32 0.0, %v578
        %v580 = vpop.f32.mrf.mxu0
        %v581 = vpop.f32.mrf.mxu0
        %582 = vdwg.mxu0
        %v583 = vmax.f32 %v577, %v579
        %584 = vst [vmem:[%s367] sm:$0xff] %v583
        %v585 = vld [vmem:[%s2] sm:$0xff]
        %s586 = smul.u32 %s22, 128
        %v587 = vlaneseq
        %v588 = vand.u32 %v587, 127
        %v589 = vstv %s586
        %v590 = vadd.s32 %v589, %v588
        %v591 = vmul.f32 %v583, %v583
        %v592 = vmin.f32 %v591, 1.0
        %v593 = vsub.f32 1.0, %v592
        %v594 = vrsqrt.pop %v593
        %v595 = vmul.f32 %v593, %v594
        %vm596 = vcmp.eq.f32.partialorder %v593, inf
        %v597 = vsel %vm596, %v593, %v595
        %vm598 = vcmp.eq.f32.partialorder %v593, 0.0
        %v599 = vand.u32 %v593, 2147483648
        %v600 = vsel %vm598, %v599, %v597
        %v601 = vmul.f32 %v583, 0.9553365
        %v602 = vmul.f32 %v600, 0.29552022
        %v603 = vsub.f32 %v601, %v602
        %vm604 = vcmp.gt.f32.partialorder %v583, -0.9553365
        %v605 = vsub.f32 %v583, 0.08865606
        %v606 = vsel %vm604, %v603, %v605
        %607 = vset.pattern.permute.xlu0 0
        %608 = vperm.xlu0 %607, %v585
        %v609 = vpop.permute.xlu0 %608
        %vm610 = vcmp.eq.s32.totalorder %v590, %v609
        %v611 = vsel %vm610, %v606, %v583
        %v612 = vmul.f32 %v611, 30.0
        %613 = vst [vmem:[%s374] sm:$0xff] %v612
        %s614 = sand.u32 %s98, 1
        %s615 = scalar_lea.sflag [#allocation4], %s614
        %s616 = sand.u32 %s98, 1
        %s617 = smul.addr %s616, 8
        %s618 = scalar_lea.vmem [#allocation3], %s617
        %s619 = sand.u32 %s124, 1
        %s620 = scalar_lea.sflag [#allocation6], %s619
        %s621 = sand.u32 %s124, 1
        %s622 = smul.addr %s621, 8
        %s623 = scalar_lea.vmem [#allocation5], %s622
        // Predicated region
        $region74: #{tpu_custom_call.1} parent=68 // pred_check
          %p624 = pneg %p108
        $region75: #{tpu_custom_call.1} parent=68 // pred_check_branch
          %626 = sbr.rel (%p624) target = $region77
        $region76: #{tpu_custom_call.1} parent=68 // pred_region
          %s628 = ssub.s32 128, 128
          %629 = vsyncadd %s615, %s628
          %s630 = smul.addr %s22, 128
          %s631 = scalar_lea.hbm %s3, %s630
          %s633 = sshll.u32 %s618, 4
          %s634 = int_to_ptr.vmem [resolvable:$true] %s633
          %636 = dma.vmem_to_hbm [thread:$0]  %s634, 128, %s631, %s615
        $region77: #{tpu_custom_call.1} parent=68 // pred_fallthru
          _
        // Predicated region
        $region78: #{tpu_custom_call.1} parent=68 // pred_check
          %p637 = pneg %p134
        $region79: #{tpu_custom_call.1} parent=68 // pred_check_branch
          %639 = sbr.rel (%p637) target = $region81
        $region80: #{tpu_custom_call.1} parent=68 // pred_region
          %s641 = ssub.s32 128, 128
          %642 = vsyncadd %s620, %s641
          %s643 = smul.addr %s22, 128
          %s644 = scalar_lea.hbm %s4, %s643
          %s646 = sshll.u32 %s623, 4
          %s647 = int_to_ptr.vmem [resolvable:$true] %s646
          %649 = dma.vmem_to_hbm [thread:$0]  %s647, 128, %s644, %s620
        $region81: #{tpu_custom_call.1} parent=68 // pred_fallthru
          _
      $region69: #{tpu_custom_call.1} parent=5 // pred_fallthru
        _
      %p650 = scmp.le.s32.totalorder 2, %s17
      // Predicated region
      $region82: #{tpu_custom_call.1} parent=5 // pred_check
        %p651 = pneg %p650
      $region83: #{tpu_custom_call.1} parent=5 // pred_check_branch
        %653 = sbr.rel (%p651) target = $region85
      $region84: #{tpu_custom_call.1} parent=5 // pred_region
        %s654 = ssub.s32 %s17, 2
        // Predicated region
        $region86: #{tpu_custom_call.1} parent=84 // pred_check
          %p655 = pneg %p114
        $region87: #{tpu_custom_call.1} parent=84 // pred_check_branch
          %657 = sbr.rel (%p655) target = $region89
        $region88: #{tpu_custom_call.1} parent=84 // pred_region
          %s658 = sand.u32 %s99, 1
          %s659 = scalar_lea.sflag [#allocation4], %s658
          %s660 = sand.u32 %s99, 1
          %s661 = smul.addr %s660, 8
          %s662 = scalar_lea.vmem [#allocation3], %s661
          %663 = dma.done %s659, 128
        $region89: #{tpu_custom_call.1} parent=84 // pred_fallthru
          _
        // Predicated region
        $region90: #{tpu_custom_call.1} parent=84 // pred_check
          %p664 = pneg %p140
        $region91: #{tpu_custom_call.1} parent=84 // pred_check_branch
          %666 = sbr.rel (%p664) target = $region93
        $region92: #{tpu_custom_call.1} parent=84 // pred_region
          %s667 = sand.u32 %s125, 1
          %s668 = scalar_lea.sflag [#allocation6], %s667
          %s669 = sand.u32 %s125, 1
          %s670 = smul.addr %s669, 8
          %s671 = scalar_lea.vmem [#allocation5], %s670
          %672 = dma.done %s668, 128
        $region93: #{tpu_custom_call.1} parent=84 // pred_fallthru
          _
      $region85: #{tpu_custom_call.1} parent=5 // pred_fallthru
        _
    $region6: #{tpu_custom_call.1} parent=1 // loop_footer
      %s21 = sadd.s32 1, %s17
    $region7: #{tpu_custom_call.1} parent=1 // loop_footer_branch
      %16 = sbr.rel target = $region3
    $region8: #{tpu_custom_call.1} parent=1 // loop_exit
      _
    %673 = vsyncpa [#allocation4], 1
    %s674 = scalar_lea.sflag [#allocation4], 1
    %675 = vsyncpa %s674, 1
    %676 = vsyncpa [#allocation6], 1
    %s677 = scalar_lea.sflag [#allocation6], 1
    %678 = vsyncpa %s677, 1

</llo_original>
